<compile_context>
chip_gen: v7x
topology: tpu7x:2x2x1
jax: 0.10.0
libtpu: 0.0.40
codegen_flags: <defaults>
</compile_context>

<pallas_src>
import functools
import numpy as np
import jax
import jax.numpy as jnp
from jax.experimental import pallas as pl
from jax.experimental.pallas import tpu as pltpu


def _focal_loss_kernel(p_ref, t_ref, alpha_ref, out_ref, acc_ref, *, gamma):
    """p_ref: (C, TS) f32 probs; t_ref: (1, TS) i32 targets; alpha_ref: (C, 1) f32.

    out_ref: (1, 1) f32 per-batch partial sum (written once, in the epilogue).
    acc_ref: (C, TS) f32 VMEM accumulator, resident across the 'arbitrary' s axis."""
    s = pl.program_id(1)

    @pl.when(s == 0)
    def _():
        acc_ref[...] = jnp.zeros_like(acc_ref)

    p = p_ref[...]          # (C, TS)
    t = t_ref[...]          # (1, TS)
    alpha = alpha_ref[...]  # (C, 1)
    C, TS = p.shape

    # one-hot(t) along the class (sublane) axis; padded lanes have t == C -> all False
    class_ids = jax.lax.broadcasted_iota(jnp.int32, (C, TS), 0)
    onehot_b = class_ids == t                           # (C, TS) bool

    # focal weight uses log-probabilities (exactly as the reference code does)
    log_p = jnp.log(p)
    focal_weight = jnp.where(onehot_b, 1.0 - log_p, log_p)   # == 1 - where(onehot, log_p, 1-log_p)
    if float(gamma) == int(gamma):
        fw_pow = focal_weight ** int(gamma)             # integer_pow: correct for negative base
    else:
        fw_pow = jnp.power(focal_weight, gamma)

    # nll_loss(p, t, weight=alpha, reduction='none') = -alpha[t] * p[t]
    # single masked sublane reduce (C is tiny); padded lanes reduce to 0
    loss_val = -jnp.sum(jnp.where(onehot_b, alpha * p, 0.0), axis=0, keepdims=True)  # (1, TS)

    # accumulate elementwise (VPU only); broadcast loss_val over classes
    acc_ref[...] += fw_pow * loss_val

    @pl.when(s == pl.num_programs(1) - 1)
    def _():
        out_ref[...] = jnp.sum(acc_ref[...]).reshape(1, 1)


def _choose_tile_s(C, S, *, max_tile=8192, vmem_budget_bytes=8 << 20):
    """Pick a lane tile (multiple of 128) and the padded S, balancing tiles to
    minimize padding while staying well under every generation's VMEM limit."""
    c_sub = ((C + 7) // 8) * 8
    # per-lane-column bytes: p double-buffered + t double-buffered + f32 accumulator
    bytes_per_lane = 2 * c_sub * 4 + 2 * 8 * 4 + c_sub * 4
    cap = (vmem_budget_bytes // bytes_per_lane) // 128 * 128
    cap = max(128, min(max_tile, cap))
    s_rounded = ((S + 127) // 128) * 128
    num_tiles = -(-s_rounded // cap)                      # ceil
    tile_s = -(-s_rounded // (num_tiles * 128)) * 128     # balanced, multiple of 128
    return tile_s, num_tiles * tile_s


def focal_loss_pallas(p, t, gamma=2.0, alpha=None, reduction="elementwise_mean",
                      max_tile_s=8192):
    """p: (N, C, *spatial) probabilities (NCHW for 4-D), t: (N, *spatial) int targets."""
    N, C = int(p.shape[0]), int(p.shape[1])
    spatial = p.shape[2:]
    S = int(np.prod(spatial)) if spatial else 1
    M = N * S

    # free reshapes on the natural NCHW layout (no transpose / moveaxis)
    p2 = p.reshape(N, C, S).astype(jnp.float32)
    t2 = t.reshape(N, 1, S).astype(jnp.int32)

    if alpha is None:
        alpha_arr = jnp.ones((C, 1), jnp.float32)
    else:
        alpha_arr = jnp.asarray(alpha, jnp.float32).reshape(C, 1)

    tile_s, s_pad_total = _choose_tile_s(C, S, max_tile=max_tile_s)
    pad = s_pad_total - S
    if pad:
        # pad probs with 1.0 (log stays finite) and targets with out-of-range class id C,
        # so padded lanes contribute exactly 0 without any in-kernel mask
        p2 = jnp.pad(p2, ((0, 0), (0, 0), (0, pad)), constant_values=1.0)
        t2 = jnp.pad(t2, ((0, 0), (0, 0), (0, pad)), constant_values=C)

    grid = (N, s_pad_total // tile_s)
    kernel = functools.partial(_focal_loss_kernel, gamma=gamma)

    partials = pl.pallas_call(
        kernel,
        out_shape=jax.ShapeDtypeStruct((N, 1, 1), jnp.float32),
        grid_spec=pltpu.PrefetchScalarGridSpec(
            num_scalar_prefetch=0,
            grid=grid,
            in_specs=[
                pl.BlockSpec((None, C, tile_s), lambda n, s: (n, 0, s)),  # p  (N, C, S)
                pl.BlockSpec((None, 1, tile_s), lambda n, s: (n, 0, s)),  # t  (N, 1, S)
                pl.BlockSpec((C, 1), lambda n, s: (0, 0)),                # alpha (C, 1)
            ],
            out_specs=pl.BlockSpec((None, 1, 1), lambda n, s: (n, 0, 0)),
            scratch_shapes=[pltpu.VMEM((C, tile_s), jnp.float32)],
        ),
        compiler_params=pltpu.CompilerParams(
            dimension_semantics=("parallel", "arbitrary"),   # batch axis -> both TCs on v7x
            vmem_limit_bytes=32 * 1024 * 1024,               # explicit, safe on v5e/v6e/v7x
        ),
    )(p2, t2, alpha_arr)

    total = jnp.sum(partials)
    if reduction == "elementwise_mean":
        return total / jnp.float32(M * C)
    elif reduction == "sum":
        return total
    else:
        # TODO(synk): reduction='none' (per-element (N,C,*S) output) not implemented in-kernel.
        raise ValueError(f"unsupported reduction: {reduction}")


def focal_loss_ref(p, t, gamma=2.0, alpha=None, reduction="elementwise_mean"):
    """Pure-JAX reference mirroring the PyTorch code, for verification."""
    C = p.shape[1]
    a = jnp.ones((C,), jnp.float32) if alpha is None else jnp.asarray(alpha, jnp.float32)
    onehot = jax.nn.one_hot(t, C, axis=1, dtype=p.dtype)              # (N, C, *S)
    p_sel = jnp.take_along_axis(p, t[:, None], axis=1)[:, 0]          # (N, *S)
    loss_val = -a[t] * p_sel                                          # (N, *S)
    log_p = jnp.log(p)
    fw = 1.0 - jnp.where(onehot == 1.0, log_p, 1.0 - log_p)
    fw_pow = fw ** int(gamma) if float(gamma) == int(gamma) else jnp.power(fw, gamma)
    fl = fw_pow * loss_val[:, None]
    if reduction == "elementwise_mean":
        return jnp.mean(fl)
    return jnp.sum(fl)


if __name__ == "__main__":
    key = jax.random.PRNGKey(0)
    N, C, H, W = 2, 4, 16, 16

    k1, k2 = jax.random.split(key)
    logits = jax.random.normal(k1, (N, C, H, W), dtype=jnp.float32)
    p = jax.nn.softmax(logits, axis=1)                       # probabilities (NOT logits)
    t = jax.random.randint(k2, (N, H, W), 0, C, dtype=jnp.int32)

    # deterministic class weights alpha in [0, 1]
    alpha = jnp.linspace(0.25, 1.0, C, dtype=jnp.float32)
    gamma = 2.0

    out = focal_loss_pallas(p, t, gamma=gamma, alpha=alpha, reduction="elementwise_mean")
    out = jax.block_until_ready(out)

    ref = focal_loss_ref(p, t, gamma=gamma, alpha=alpha, reduction="elementwise_mean")
    ref = jax.block_until_ready(ref)

    assert np.allclose(np.asarray(out), np.asarray(ref), rtol=1e-5, atol=1e-6), (out, ref)
    print("KERNEL_OK")
</pallas_src>

<mosaic_0001>
module attributes {stable_mosaic.version = 11 : i64} {
  func.func @_focal_loss_kernel(%arg0: i32, %arg1: i32, %arg2: memref<1x4x256xf32, #tpu.memory_space<vmem>>, %arg3: memref<1x1x256xi32, #tpu.memory_space<vmem>>, %arg4: memref<4x1xf32, #tpu.memory_space<vmem>>, %arg5: memref<1x1x1xf32, #tpu.memory_space<vmem>>, %arg6: memref<4x256xf32, #tpu.memory_space<vmem>>) attributes {dimension_semantics = [#tpu.dimension_semantics<parallel>, #tpu.dimension_semantics<arbitrary>], iteration_bounds = array<i64: 2, 1>, scalar_prefetch = 0 : i64, scratch_operands = 1 : i64, tpu.core_type = #tpu.core_type<tc>, window_params = [{transform_indices = @transform_0, window_bounds = array<i64: 1, 4, 256>}, {transform_indices = @transform_1, window_bounds = array<i64: 1, 1, 256>}, {pipeline_mode = #tpu.pipeline_mode<synchronous>, transform_indices = @transform_2, window_bounds = array<i64: 4, 1>}, {transform_indices = @transform_3, window_bounds = array<i64: 1, 1, 1>}]} {
    %c0_i32 = arith.constant 0 : i32
    %0 = arith.cmpi eq, %arg1, %c0_i32 : i32
    %1 = arith.extui %0 : i1 to i32
    %c0_i32_0 = arith.constant 0 : i32
    %2 = arith.cmpi ne, %1, %c0_i32_0 : i32
    scf.if %2 {
      %cst_17 = arith.constant 0.000000e+00 : f32
      %32 = vector.broadcast %cst_17 : f32 to vector<4x256xf32>
      %c0_18 = arith.constant 0 : index
      %c0_19 = arith.constant 0 : index
      %33 = vector.load %arg6[%c0_18, %c0_19] : memref<4x256xf32, #tpu.memory_space<vmem>>, vector<4x256xf32>
      tpu.vector_store %arg6[%c0_18, %c0_19], %32 {strides = array<i32>} : memref<4x256xf32, #tpu.memory_space<vmem>>, vector<4x256xf32>,
    } else {
    }
    %c0 = arith.constant 0 : index
    %c0_1 = arith.constant 0 : index
    %c0_2 = arith.constant 0 : index
    %3 = vector.load %arg2[%c0, %c0_1, %c0_2] : memref<1x4x256xf32, #tpu.memory_space<vmem>>, vector<1x4x256xf32>
    %4 = vector.shape_cast %3 : vector<1x4x256xf32> to vector<4x256xf32>
    %c0_3 = arith.constant 0 : index
    %c0_4 = arith.constant 0 : index
    %c0_5 = arith.constant 0 : index
    %5 = vector.load %arg3[%c0_3, %c0_4, %c0_5] : memref<1x1x256xi32, #tpu.memory_space<vmem>>, vector<1x1x256xi32>
    %6 = vector.shape_cast %5 : vector<1x1x256xi32> to vector<1x256xi32>
    %c0_6 = arith.constant 0 : index
    %c0_7 = arith.constant 0 : index
    %7 = vector.load %arg4[%c0_6, %c0_7] : memref<4x1xf32, #tpu.memory_space<vmem>>, vector<4x1xf32>
    %8 = tpu.iota {dimensions = array<i32: 0>} : vector<4x256xi32>
    %9 = vector.broadcast %6 : vector<1x256xi32> to vector<4x256xi32>
    %10 = arith.cmpi eq, %8, %9 : vector<4x256xi32>
    %11 = math.log %4 : vector<4x256xf32>
    %cst = arith.constant 1.000000e+00 : f32
    %12 = vector.broadcast %cst : f32 to vector<4x256xf32>
    %13 = arith.subf %12, %11 : vector<4x256xf32>
    %14 = arith.select %10, %13, %11 : vector<4x256xi1>, vector<4x256xf32>
    %15 = arith.mulf %14, %14 : vector<4x256xf32>
    %16 = vector.broadcast %7 : vector<4x1xf32> to vector<4x256xf32>
    %17 = arith.mulf %16, %4 : vector<4x256xf32>
    %cst_8 = arith.constant 0.000000e+00 : f32
    %18 = vector.broadcast %cst_8 : f32 to vector<4x256xf32>
    %19 = arith.select %10, %17, %18 : vector<4x256xi1>, vector<4x256xf32>
    %cst_9 = arith.constant dense<0.000000e+00> : vector<256xf32>
    %20 = vector.multi_reduction <add>, %19, %cst_9 [0] : vector<4x256xf32> to vector<256xf32>
    %21 = vector.shape_cast %20 : vector<256xf32> to vector<1x256xf32>
    %cst_10 = arith.constant 0.000000e+00 : f32
    %22 = vector.broadcast %cst_10 : f32 to vector<1x256xf32>
    %23 = arith.subf %22, %21 : vector<1x256xf32>
    %c0_11 = arith.constant 0 : index
    %c0_12 = arith.constant 0 : index
    %24 = vector.load %arg6[%c0_11, %c0_12] : memref<4x256xf32, #tpu.memory_space<vmem>>, vector<4x256xf32>
    %25 = vector.broadcast %23 : vector<1x256xf32> to vector<4x256xf32>
    %26 = arith.mulf %15, %25 : vector<4x256xf32>
    %27 = arith.addf %24, %26 : vector<4x256xf32>
    %c0_13 = arith.constant 0 : index
    %c0_14 = arith.constant 0 : index
    %28 = vector.load %arg6[%c0_13, %c0_14] : memref<4x256xf32, #tpu.memory_space<vmem>>, vector<4x256xf32>
    tpu.vector_store %arg6[%c0_13, %c0_14], %27 {strides = array<i32>} : memref<4x256xf32, #tpu.memory_space<vmem>>, vector<4x256xf32>,
    %c0_i32_15 = arith.constant 0 : i32
    %29 = arith.cmpi eq, %arg1, %c0_i32_15 : i32
    %30 = arith.extui %29 : i1 to i32
    %c0_i32_16 = arith.constant 0 : i32
    %31 = arith.cmpi ne, %30, %c0_i32_16 : i32
    scf.if %31 {
      %c0_17 = arith.constant 0 : index
      %c0_18 = arith.constant 0 : index
      %32 = vector.load %arg6[%c0_17, %c0_18] : memref<4x256xf32, #tpu.memory_space<vmem>>, vector<4x256xf32>
      %33 = vector.shape_cast %32 : vector<4x256xf32> to vector<1x4x256xf32>
      %cst_19 = arith.constant dense<0.000000e+00> : vector<1xf32>
      %34 = vector.multi_reduction <add>, %33, %cst_19 [1, 2] : vector<1x4x256xf32> to vector<1xf32>
      %35 = vector.shape_cast %34 : vector<1xf32> to vector<1x1x1xf32>
      %36 = vector.extract %35[0, 0, 0] : f32 from vector<1x1x1xf32>
      %37 = vector.broadcast %36 : f32 to vector<1x1xf32>
      %c0_20 = arith.constant 0 : index
      %c0_21 = arith.constant 0 : index
      %c0_22 = arith.constant 0 : index
      %38 = vector.load %arg5[%c0_20, %c0_21, %c0_22] : memref<1x1x1xf32, #tpu.memory_space<vmem>>, vector<1x1x1xf32>
      %39 = vector.shape_cast %38 : vector<1x1x1xf32> to vector<1x1xf32>
      %40 = vector.shape_cast %37 : vector<1x1xf32> to vector<1x1x1xf32>
      tpu.vector_store %arg5[%c0_20, %c0_21, %c0_22], %40 {strides = array<i32>} : memref<1x1x1xf32, #tpu.memory_space<vmem>>, vector<1x1x1xf32>,
    } else {
    }
    return
  }
  func.func @transform_0(%arg0: i32, %arg1: i32) -> (i32, i32, i32) {
    %c0_i32 = arith.constant 0 : i32
    %c0_i32_0 = arith.constant 0 : i32
    return %arg0, %c0_i32, %arg1 : i32, i32, i32
  }
  func.func @transform_1(%arg0: i32, %arg1: i32) -> (i32, i32, i32) {
    %c0_i32 = arith.constant 0 : i32
    %c0_i32_0 = arith.constant 0 : i32
    return %arg0, %c0_i32, %arg1 : i32, i32, i32
  }
  func.func @transform_2(%arg0: i32, %arg1: i32) -> (i32, i32) {
    %c0_i32 = arith.constant 0 : i32
    %c0_i32_0 = arith.constant 0 : i32
    %c0_i32_1 = arith.constant 0 : i32
    return %c0_i32, %c0_i32_0 : i32, i32
  }
  func.func @transform_3(%arg0: i32, %arg1: i32) -> (i32, i32, i32) {
    %c0_i32 = arith.constant 0 : i32
    %c0_i32_0 = arith.constant 0 : i32
    %c0_i32_1 = arith.constant 0 : i32
    return %arg0, %c0_i32, %c0_i32_0 : i32, i32, i32
  }
}

</mosaic_0001>

<llo_original>
// kernel: tpu_custom_call.1
$region0: #{tpu_custom_call.1}
  #allocation0 [shape = 'u32[]', space=smem, size = 0x4, offset = 0x4, fixed_abs, tag = 'smem constant byte address 0x4 - core index']
  #allocation1 [shape = 'u32[144,128]{1,0:T(1,128)}', space=vmem, size = 0x12000, scoped, tag = 'internal scratch']
  #allocation2 [shape = 'f32[4,256]{1,0:T(4,128)}', space=vmem, size = 0x1000, scoped, tag = 'scratch operand']
  %s0 = inlined_call_operand.hbm [shape: f32[2,4,256], index: 0, kind: input, shape index: {}]
  %s1 = inlined_call_operand.vmem [shape: s32[2,1,256], index: 1, kind: input, shape index: {}]
  %s2 = inlined_call_operand.vmem [shape: f32[4,1], index: 2, kind: input, shape index: {}]
  %s3 = inlined_call_operand.vmem [shape: f32[2,1,1], index: 3, kind: output, shape index: {}]
  %s4 = sld [smem:[#allocation0]]
  $region57: #{tpu_custom_call.1} parent=0
    _
  %s6 = ssub.s32 1, %s4
  %s7 = scalar_select 0, %s6, %s4
  $region1: #{tpu_custom_call.1} parent=0
    #allocation3 [shape = 'u8[8192]{0}', space=vmem, size = 0x2000, scoped, tag = 'input window, operand 0']
    #allocation4 [shape = 's32[2]{0}', space=sflag, size = 0x8, scoped, tag = 'scoped memory for tpu_custom_call.1']
    %8 = vsyncpa [#allocation4], 0
    %s9 = scalar_lea.sflag [#allocation4], 1
    %10 = vsyncpa %s9, 0
    loop: start=0, step=1, limit=4
    $region2: #{tpu_custom_call.1} parent=1 // loop_pre_header
      _
    $region3: #{tpu_custom_call.1} parent=1 // loop_header
      %s12 = sphi 0, %s16
      %p13 = scmp.ge.s32.totalorder %s12, 4
      %s19 = sphi 0, %s31
      %s20 = sphi 0, %s27
      %s21 = sphi 0, %s19
      %s22 = sphi 0, %s20
      %s23 = sphi 0, %s21
      %s24 = sphi 0, %s22
      %s36 = sphi 0, %s38
      %s39 = sphi 0, %s36
      %s40 = sphi 0, %s39
      %s56 = sphi 0, %s40
      %s64 = sphi 0, %s66
      %s67 = sphi 0, %s64
      %s68 = sphi 0, %s67
      %s84 = sphi 0, %s68
      %s88 = sphi 0, %s88
      %s90 = sphi 0, %s88
      %s91 = sphi 0, %s90
      %s105 = sphi 0, %s91
      %s111 = sphi 0, %s113
      %s114 = sphi 0, %s111
      %s115 = sphi 0, %s114
      %s131 = sphi 0, %s115
    $region4: #{tpu_custom_call.1} parent=1 // loop_header_branch
      %15 = sbr.rel (%p13) target = $region8
    $region5: #{tpu_custom_call.1} parent=1 // loop_body
      %s17 = ssub.s32 %s12, 1
      %s18 = ssub.s32 %s12, 2
      %s25 = sadd.s32 1, %s20
      %p26 = scmp.ge.s32.totalorder %s25, 1
      %s27 = scalar_select %p26, 0, %s25
      %s28 = sadd.s32 1, %s19
      %s29 = scalar_select %p26, %s28, %s19
      %p30 = scmp.ge.s32.totalorder %s29, 2
      %s31 = scalar_select %p30, 0, %s29
      %s32 = ssub.s32 %s19, %s31
      %s33 = ssub.s32 %s20, %s27
      %s34 = sor.u32 %s32, %s33
      %p35 = scmp.eq.s32.totalorder %s34, 0
      %s37 = sadd.s32 %s36, 1
      %s38 = scalar_select %p35, %s36, %s37
      %p41 = pneg %p35
      %p42 = scmp.eq.s32.totalorder %s12, 1
      %p43 = por %p41, %p42
      %p44 = scmp.ne.s32.totalorder %s36, %s39
      %p45 = scmp.eq.s32.totalorder %s12, 0
      %p46 = por %p44, %p45
      %p47 = scmp.ne.s32.totalorder %s36, %s39
      %p48 = scmp.eq.s32.totalorder %s17, 1
      %p49 = por %p47, %p48
      %p50 = scmp.ne.s32.totalorder %s39, %s40
      %p51 = scmp.eq.s32.totalorder %s17, 0
      %p52 = por %p50, %p51
      %p53 = scmp.ne.s32.totalorder %s39, %s40
      %p54 = scmp.eq.s32.totalorder %s18, 1
      %p55 = por %p53, %p54
      %p57 = scmp.ne.s32.totalorder %s40, %s56
      %p58 = scmp.eq.s32.totalorder %s18, 0
      %p59 = por %p57, %p58
      %s60 = ssub.s32 %s19, %s31
      %s61 = ssub.s32 %s20, %s27
      %s62 = sor.u32 %s60, %s61
      %p63 = scmp.eq.s32.totalorder %s62, 0
      %s65 = sadd.s32 %s64, 1
      %s66 = scalar_select %p63, %s64, %s65
      %p69 = pneg %p63
      %p70 = scmp.eq.s32.totalorder %s12, 1
      %p71 = por %p69, %p70
      %p72 = scmp.ne.s32.totalorder %s64, %s67
      %p73 = scmp.eq.s32.totalorder %s12, 0
      %p74 = por %p72, %p73
      %p75 = scmp.ne.s32.totalorder %s64, %s67
      %p76 = scmp.eq.s32.totalorder %s17, 1
      %p77 = por %p75, %p76
      %p78 = scmp.ne.s32.totalorder %s67, %s68
      %p79 = scmp.eq.s32.totalorder %s17, 0
      %p80 = por %p78, %p79
      %p81 = scmp.ne.s32.totalorder %s67, %s68
      %p82 = scmp.eq.s32.totalorder %s18, 1
      %p83 = por %p81, %p82
      %p85 = scmp.ne.s32.totalorder %s68, %s84
      %p86 = scmp.eq.s32.totalorder %s18, 0
      %p87 = por %p85, %p86
      %s89 = sadd.s32 %s88, 1
      %p92 = scmp.eq.s32.totalorder %s12, 1
      %p93 = scmp.ne.s32.totalorder %s88, %s90
      %p94 = scmp.eq.s32.totalorder %s12, 0
      %p95 = por %p93, %p94
      %p96 = scmp.ne.s32.totalorder %s88, %s90
      %p97 = scmp.eq.s32.totalorder %s17, 1
      %p98 = por %p96, %p97
      %p99 = scmp.ne.s32.totalorder %s90, %s91
      %p100 = scmp.eq.s32.totalorder %s17, 0
      %p101 = por %p99, %p100
      %p102 = scmp.ne.s32.totalorder %s90, %s91
      %p103 = scmp.eq.s32.totalorder %s18, 1
      %p104 = por %p102, %p103
      %p106 = scmp.ne.s32.totalorder %s91, %s105
      %p107 = scmp.eq.s32.totalorder %s18, 0
      %p108 = por %p106, %p107
      %s109 = ssub.s32 %s19, %s31
      %p110 = scmp.eq.s32.totalorder %s109, 0
      %s112 = sadd.s32 %s111, 1
      %s113 = scalar_select %p110, %s111, %s112
      %p116 = pneg %p110
      %p117 = scmp.eq.s32.totalorder %s12, 1
      %p118 = por %p116, %p117
      %p119 = scmp.ne.s32.totalorder %s111, %s114
      %p120 = scmp.eq.s32.totalorder %s12, 0
      %p121 = por %p119, %p120
      %p122 = scmp.ne.s32.totalorder %s111, %s114
      %p123 = scmp.eq.s32.totalorder %s17, 1
      %p124 = por %p122, %p123
      %p125 = scmp.ne.s32.totalorder %s114, %s115
      %p126 = scmp.eq.s32.totalorder %s17, 0
      %p127 = por %p125, %p126
      %p128 = scmp.ne.s32.totalorder %s114, %s115
      %p129 = scmp.eq.s32.totalorder %s18, 1
      %p130 = por %p128, %p129
      %p132 = scmp.ne.s32.totalorder %s115, %s131
      %p133 = scmp.eq.s32.totalorder %s18, 0
      %p134 = por %p132, %p133
      %p135 = scmp.le.s32.totalorder 1, %s12
      %p136 = scmp.lt.s32.totalorder %s12, 3
      %p137 = pnand %p135, %p136
      %p138 = pneg %p137
      // Predicated region
      $region9: #{tpu_custom_call.1} parent=5 // pred_check
        _
      $region10: #{tpu_custom_call.1} parent=5 // pred_check_branch
        %140 = sbr.rel (%p137) target = $region12
      $region11: #{tpu_custom_call.1} parent=5 // pred_region
        %s141 = ssub.s32 %s12, 1
        // Predicated region
        $region13: #{tpu_custom_call.1} parent=11 // pred_check
          %p142 = pneg %p101
        $region14: #{tpu_custom_call.1} parent=11 // pred_check_branch
          %144 = sbr.rel (%p142) target = $region16
        $region15: #{tpu_custom_call.1} parent=11 // pred_region
          _
        $region16: #{tpu_custom_call.1} parent=11 // pred_fallthru
          _
      $region12: #{tpu_custom_call.1} parent=5 // pred_fallthru
        _
      %p145 = scmp.lt.s32.totalorder %s12, 2
      // Predicated region
      $region17: #{tpu_custom_call.1} parent=5 // pred_check
        %p146 = pneg %p145
      $region18: #{tpu_custom_call.1} parent=5 // pred_check_branch
        %148 = sbr.rel (%p146) target = $region20
      $region19: #{tpu_custom_call.1} parent=5 // pred_region
        // Predicated region
        $region21: #{tpu_custom_call.1} parent=19 // pred_check
          %p149 = pneg %p46
        $region22: #{tpu_custom_call.1} parent=19 // pred_check_branch
          %151 = sbr.rel (%p149) target = $region24
        $region23: #{tpu_custom_call.1} parent=19 // pred_region
          %s152 = sand.u32 %s36, 1
          %s153 = scalar_lea.sflag [#allocation4], %s152
          %s154 = sand.u32 %s36, 1
          %s155 = smul.addr %s154, 8
          %s156 = scalar_lea.vmem [#allocation3], %s155
          %s157 = smul.u32 2, %s20
          %s159 = ssub.s32 128, 128
          %160 = vsyncadd %s153, %s159
          %s161 = smul.addr %s19, 2
          %s162 = sadd.s32 %s157, %s161
          %s163 = smul.addr %s162, 64
          %s164 = scalar_lea.hbm %s0, %s163
          %s166 = sshll.u32 %s156, 4
          %s167 = int_to_ptr.vmem [resolvable:$true] %s166
          %169 = dma.hbm_to_vmem [thread:$0]  %s164, 128, %s167, %s153
        $region24: #{tpu_custom_call.1} parent=19 // pred_fallthru
          _
        // Predicated region
        $region25: #{tpu_custom_call.1} parent=19 // pred_check
          %p170 = pneg %p74
        $region26: #{tpu_custom_call.1} parent=19 // pred_check_branch
          %172 = sbr.rel (%p170) target = $region28
        $region27: #{tpu_custom_call.1} parent=19 // pred_region
          %s173 = smul.u32 2, %s20
          %p174 = scmp.lt.s32.totalorder %s19, 1
          %s175 = scalar_select %p174, %s19, 1
          %p176 = scmp.lt.s32.totalorder %s173, 1
          %s177 = scalar_select %p176, %s173, 1
          %s178 = smul.addr %s175, 2
          %s179 = sadd.s32 %s177, %s178
          %s180 = scalar_lea.vmem %s1, %s179
          %s181 = smul.u32 2, %s20
        $region28: #{tpu_custom_call.1} parent=19 // pred_fallthru
          _
      $region20: #{tpu_custom_call.1} parent=5 // pred_fallthru
        _
      %p182 = scmp.le.s32.totalorder 1, %s12
      %p183 = scmp.lt.s32.totalorder %s12, 3
      %p184 = pnand %p182, %p183
      %p185 = pneg %p184
      // Predicated region
      $region29: #{tpu_custom_call.1} parent=5 // pred_check
        _
      $region30: #{tpu_custom_call.1} parent=5 // pred_check_branch
        %187 = sbr.rel (%p184) target = $region32
      $region31: #{tpu_custom_call.1} parent=5 // pred_region
        %s188 = ssub.s32 %s12, 1
        %s189 = sand.u32 %s39, 1
        %s190 = scalar_lea.sflag [#allocation4], %s189
        %s191 = sand.u32 %s39, 1
        %s192 = smul.addr %s191, 8
        %s193 = scalar_lea.vmem [#allocation3], %s192
        // Predicated region
        $region33: #{tpu_custom_call.1} parent=31 // pred_check
          %p194 = pneg %p52
        $region34: #{tpu_custom_call.1} parent=31 // pred_check_branch
          %196 = sbr.rel (%p194) target = $region36
        $region35: #{tpu_custom_call.1} parent=31 // pred_region
          %197 = dma.done %s190, 128
        $region36: #{tpu_custom_call.1} parent=31 // pred_fallthru
          _
        %s198 = sand.u32 %s39, 1
        %s199 = scalar_lea.sflag [#allocation4], %s198
        %s200 = sand.u32 %s39, 1
        %s201 = smul.addr %s200, 8
        %s202 = scalar_lea.vmem [#allocation3], %s201
        %p203 = pneg %p52
        %p204 = pneg %p49
        %s205 = smul.u32 2, %s22
        %p206 = scmp.lt.s32.totalorder %s21, 1
        %s207 = scalar_select %p206, %s21, 1
        %p208 = scmp.lt.s32.totalorder %s205, 1
        %s209 = scalar_select %p208, %s205, 1
        %s210 = smul.addr %s207, 2
        %s211 = sadd.s32 %s209, %s210
        %s212 = scalar_lea.vmem %s1, %s211
        %p213 = pneg %p80
        %p214 = pneg %p77
        %p215 = pneg %p101
        %p216 = pneg %p98
        %p217 = pneg %p127
        %p218 = pneg %p124
        %p219 = scmp.lt.s32.totalorder %s21, 1
        %s220 = scalar_select %p219, %s21, 1
        %s221 = scalar_lea.vmem %s3, %s220
        %s222 = smul.u32 2, %s22
        %s223 = smul.u32 2, %s22
        %p224 = scmp.lt.s32.totalorder %s21, 1
        %s225 = scalar_select %p224, %s21, 1
        %p226 = scmp.lt.s32.totalorder %s223, 1
        %s227 = scalar_select %p226, %s223, 1
        %s228 = smul.addr %s225, 2
        %s229 = sadd.s32 %s227, %s228
        %s230 = scalar_lea.vmem %s1, %s229
        %s231 = smul.u32 2, %s22
        %p232 = scmp.lt.s32.totalorder %s21, 1
        %s233 = scalar_select %p232, %s21, 1
        %s234 = scalar_lea.vmem %s3, %s233
        %p235 = scmp.eq.s32.totalorder %s22, 0
        // Predicated region
        $region37: #{tpu_custom_call.1} parent=31 // pred_check
          %p236 = pneg %p235
        $region38: #{tpu_custom_call.1} parent=31 // pred_check_branch
          %238 = sbr.rel (%p236) target = $region40
        $region39: #{tpu_custom_call.1} parent=31 // pred_region
          %239 = vst [vmem:[#allocation2] sm:$0xff] 0.0
        $region40: #{tpu_custom_call.1} parent=31 // pred_fallthru
          _
        %v240 = vld [vmem:[%s193] sm:$0xff]
        %v241 = vld [vmem:[%s230] sm:$0x3]
        %v242 = vld [vmem:[%s2] sm:$0xf]
        %v243 = vlaneseq
        %v244 = vshrl.u32 %v243, 7
        %v245 = vlaneseq
        %v246 = vshrl.u32 %v245, 7
        %v247 = vsub.s32 0, %v246
        %v248 = vrot.slane %v241, %v247
        %v249 = vlaneseq
        %v250 = vshrl.u32 %v249, 7
        %v251 = vsub.s32 1, %v250
        %v252 = vrot.slane %v241, %v251
        %vm253 = vcmp.eq.s32.totalorder %v244, %v248
        %vm254 = vcmp.eq.s32.totalorder %v244, %v252
        %v255 = vlog2.pop %v240
        %v256 = vmul.f32 %v255, 0.6931472
        %v257 = vsub.f32 1.0, %v256
        %v259 = vcombine.high %v257, %v257
        %v262 = vcombine.high %v256, %v256
        %v264 = vsel %vm253, %v257, %v256
        %v265 = vsel %vm254, %v259, %v262
        %v266 = vmul.f32 %v264, %v264
        %v267 = vmul.f32 %v265, %v265
        %269 = vset.pattern.permute.xlu0 0
        %270 = vperm.xlu0 %269, %v242
        %v271 = vpop.permute.xlu0 %270
        %v274 = vcombine.high %v240, %v240
        %v276 = vmul.f32 %v271, %v240
        %v277 = vmul.f32 %v271, %v274
        %v278 = vsel %vm253, %v276, 0.0
        %v279 = vsel %vm254, %v277, 0.0
        %vm280 = vcmask 1043456
        %v281 = vsel %vm280, %v278, 0.0
        %v282 = vrot.slane %v281, 4
        %v283 = vadd.f32 %v281, %v282
        %v284 = vrot.slane %v283, 2
        %v285 = vadd.f32 %v283, %v284
        %v286 = vrot.slane %v285, 1
        %v287 = vadd.f32 %v285, %v286
        %v288 = vsel %vm280, %v279, 0.0
        %v289 = vrot.slane %v288, 4
        %v290 = vadd.f32 %v288, %v289
        %v291 = vrot.slane %v290, 2
        %v292 = vadd.f32 %v290, %v291
        %v293 = vrot.slane %v292, 1
        %v294 = vadd.f32 %v292, %v293
        %v295 = vsub.f32 0.0, %v287
        %v296 = vsub.f32 0.0, %v294
        %v297 = vld [vmem:[#allocation2] sm:$0xff]
        %v298 = vmul.f32 %v266, %v295
        %v299 = vmul.f32 %v267, %v296
        %v302 = vcombine.low %v298, %v299
        %v304 = vadd.f32 %v297, %v302
        %305 = vst [vmem:[#allocation2] sm:$0xff] %v304
        // Predicated region
        $region41: #{tpu_custom_call.1} parent=31 // pred_check
          %p306 = pneg %p235
        $region42: #{tpu_custom_call.1} parent=31 // pred_check_branch
          %308 = sbr.rel (%p306) target = $region44
        $region43: #{tpu_custom_call.1} parent=31 // pred_region
          %v309 = vld [vmem:[#allocation2] sm:$0xff]
          %v311 = vcombine.high %v309, %v309
          %v313 = vsel %vm280, %v309, 0.0
          %v314 = vsel %vm280, %v311, 0.0
          %v315 = vadd.f32 %v313, %v314
          %316 = vadd.xlane.f32.xlu0 %v315
          %v317 = vpop.xlane.xlu0 %316
          %v318 = vrot.slane %v317, 4
          %v319 = vadd.f32 %v317, %v318
          %v320 = vrot.slane %v319, 2
          %v321 = vadd.f32 %v319, %v320
          %v322 = vrot.slane %v321, 1
          %v323 = vadd.f32 %v321, %v322
          %s324 = vtos %v323
          %v325 = vstv %s324
          %vm326 = vcmask 0
          %327 = vst.msk [vmem:[%s234] sm:$0x1] %vm326, %v325
        $region44: #{tpu_custom_call.1} parent=31 // pred_fallthru
          _
        %p328 = scmp.lt.s32.totalorder %s21, 1
        %s329 = scalar_select %p328, %s21, 1
        %s330 = scalar_lea.vmem %s3, %s329
        // Predicated region
        $region45: #{tpu_custom_call.1} parent=31 // pred_check
          %p331 = pneg %p124
        $region46: #{tpu_custom_call.1} parent=31 // pred_check_branch
          %333 = sbr.rel (%p331) target = $region48
        $region47: #{tpu_custom_call.1} parent=31 // pred_region
          _
        $region48: #{tpu_custom_call.1} parent=31 // pred_fallthru
          _
      $region32: #{tpu_custom_call.1} parent=5 // pred_fallthru
        _
      %p334 = scmp.le.s32.totalorder 2, %s12
      // Predicated region
      $region49: #{tpu_custom_call.1} parent=5 // pred_check
        %p335 = pneg %p334
      $region50: #{tpu_custom_call.1} parent=5 // pred_check_branch
        %337 = sbr.rel (%p335) target = $region52
      $region51: #{tpu_custom_call.1} parent=5 // pred_region
        %s338 = ssub.s32 %s12, 2
        // Predicated region
        $region53: #{tpu_custom_call.1} parent=51 // pred_check
          %p339 = pneg %p130
        $region54: #{tpu_custom_call.1} parent=51 // pred_check_branch
          %341 = sbr.rel (%p339) target = $region56
        $region55: #{tpu_custom_call.1} parent=51 // pred_region
          %p342 = scmp.lt.s32.totalorder %s23, 1
          %s343 = scalar_select %p342, %s23, 1
          %s344 = scalar_lea.vmem %s3, %s343
        $region56: #{tpu_custom_call.1} parent=51 // pred_fallthru
          _
      $region52: #{tpu_custom_call.1} parent=5 // pred_fallthru
        _
    $region6: #{tpu_custom_call.1} parent=1 // loop_footer
      %s16 = sadd.s32 1, %s12
    $region7: #{tpu_custom_call.1} parent=1 // loop_footer_branch
      %11 = sbr.rel target = $region3
    $region8: #{tpu_custom_call.1} parent=1 // loop_exit
      _
    %345 = vsyncpa [#allocation4], 1
    %s346 = scalar_lea.sflag [#allocation4], 1
    %347 = vsyncpa %s346, 1

</llo_original>
